<compile_context>
chip_gen: v7x
topology: tpu7x:2x2x1
jax: 0.10.0
libtpu: 0.0.40
codegen_flags: <defaults>
</compile_context>

<pallas_src>
import jax
import jax.numpy as jnp
from jax import lax
from jax.experimental import pallas as pl
from jax.experimental.pallas import tpu as pltpu


def _lora_attn_head_kernel(x_ref, wq_ref, wk_ref, wv_ref, wo_ref, bproj_ref,
                           o_ref, acc_ref):
    """One (batch, head) grid step.

    x_ref:    (1, N, C)  bf16   same block across the head axis
    wq/wk/wv: (1, C, hd) bf16   per-head projection slabs (LoRA + scale folded)
    wo_ref:   (1, hd, C) bf16   per-head slab of the output projection
    bproj_ref:(1, C)     f32    output-projection bias
    o_ref:    (1, N, C)         written on the last head
    acc_ref:  (N, C)     f32    VMEM scratch accumulator (persists across heads)
    """
    h = pl.program_id(1)

    @pl.when(h == 0)
    def _():
        # Start the output-projection accumulator from the bias (proj bias add
        # folded into the init, proj_drop = 0 -> identity).
        acc_ref[...] = jnp.broadcast_to(bproj_ref[...], acc_ref.shape)

    x = x_ref[0]                                                  # (N, C) bf16

    # Per-head projections. Attention scale and the LoRA deltas for q/v are
    # already folded into wq/wv on the host.
    qh = jnp.dot(x, wq_ref[0], preferred_element_type=jnp.float32)  # (N, hd)
    kh = jnp.dot(x, wk_ref[0], preferred_element_type=jnp.float32)  # (N, hd)
    vh = jnp.dot(x, wv_ref[0], preferred_element_type=jnp.float32)  # (N, hd)
    qh = qh.astype(x.dtype)
    kh = kh.astype(x.dtype)
    vh = vh.astype(x.dtype)

    # scores = q @ k^T, contracting the last dims (no explicit transpose).
    s = lax.dot_general(qh, kh, (((1,), (1,)), ((), ())),
                        preferred_element_type=jnp.float32)       # (N, N) f32
    s = s - jnp.max(s, axis=-1, keepdims=True)
    p = jnp.exp(s)                                                # unnormalized
    inv_l = pl.reciprocal(jnp.sum(p, axis=-1, keepdims=True),
                          approx=True)                            # (N, 1) f32

    # PV matmul first, normalize after (N*hd multiplies instead of N*N).
    ctx = jnp.dot(p.astype(x.dtype), vh,
                  preferred_element_type=jnp.float32)             # (N, hd) f32
    ctx = (ctx * inv_l).astype(x.dtype)                           # attn_drop=0

    # Accumulate this head's contribution to the output projection.
    acc_ref[...] += jnp.dot(ctx, wo_ref[0],
                            preferred_element_type=jnp.float32)   # (N, C) f32

    @pl.when(h == pl.num_programs(1) - 1)
    def _():
        o_ref[0] = acc_ref[...].astype(o_ref.dtype)


def prepare_lora_attention(params, *, num_heads, lora_r, lora_alpha,
                           qk_scale=None, compute_dtype=jnp.bfloat16):
    """Host-side, once-per-model weight prep (hoisted out of the hot path).

    - Splits Wqkv into per-head right-multiply slabs (H, C, hd).
    - Merges the LoRA adapters into the q/v projections (valid when the
      adapters are frozen relative to Wqkv at call time, i.e. inference).
    - Folds the attention scale into the q projection.
    - Casts everything to bf16 (bias stays f32).
    """
    wqkv = params["wqkv"].astype(jnp.float32)                     # (3C, C)
    C = wqkv.shape[1]
    hd = C // num_heads
    scale = qk_scale if qk_scale is not None else hd ** (-0.5)
    lora_scale = lora_alpha / lora_r

    wq = wqkv[0 * C:1 * C]                                        # (C, C)
    wk = wqkv[1 * C:2 * C]
    wv = wqkv[2 * C:3 * C]

    # delta_W^T = A1^T @ (alpha/r * A2^T), computed in f32.
    dq_t = params["qa1"].astype(jnp.float32).T @ params["qa2"].astype(jnp.float32).T
    dv_t = params["va1"].astype(jnp.float32).T @ params["va2"].astype(jnp.float32).T

    wq_t = (wq.T + dq_t * lora_scale) * scale                     # scale folded
    wk_t = wk.T
    wv_t = wv.T + dv_t * lora_scale
    wo_t = params["wproj"].astype(jnp.float32).T                  # (C, C)

    def to_out_heads(w_t):   # (C, C) -> (H, C, hd): split output columns/head
        return w_t.reshape(C, num_heads, hd).transpose(1, 0, 2).astype(compute_dtype)

    return {
        "wq": to_out_heads(wq_t),
        "wk": to_out_heads(wk_t),
        "wv": to_out_heads(wv_t),
        "wo": wo_t.reshape(num_heads, hd, C).astype(compute_dtype),  # (H, hd, C)
        "bproj": params["bproj"].astype(jnp.float32).reshape(1, C),
        "num_heads": num_heads,
        "head_dim": hd,
        "dim": C,
        "compute_dtype": compute_dtype,
    }


def lora_attention(x, prepped):
    """Pallas implementation of LoraAttention.forward(x, prev=None) with
    res_score=False, attn_drop=proj_drop=0.0, lora_moe=0. Returns (out, None)."""
    # TODO(synk): res_score=True path (prev score residual) not implemented.
    B, N, C = x.shape
    H = prepped["num_heads"]
    hd = prepped["head_dim"]
    cdt = prepped["compute_dtype"]
    x_c = x.astype(cdt)

    # Advisory cost estimate for XLA's scheduler.
    flops = int(B * (8 * N * C * C + 4 * N * N * C))
    transcendentals = int(B * H * (N * N + N))
    bytes_accessed = int(
        x_c.size * x_c.dtype.itemsize
        + sum(int(prepped[k].size) * prepped[k].dtype.itemsize
              for k in ("wq", "wk", "wv", "wo", "bproj"))
        + B * N * C * x.dtype.itemsize)

    out = pl.pallas_call(
        _lora_attn_head_kernel,
        out_shape=jax.ShapeDtypeStruct((B, N, C), x.dtype),
        grid_spec=pltpu.PrefetchScalarGridSpec(
            num_scalar_prefetch=0,
            grid=(B, H),                                   # heads = reduction
            in_specs=[
                pl.BlockSpec((1, N, C), lambda b, h: (b, 0, 0)),   # x
                pl.BlockSpec((1, C, hd), lambda b, h: (h, 0, 0)),  # Wq head slab
                pl.BlockSpec((1, C, hd), lambda b, h: (h, 0, 0)),  # Wk head slab
                pl.BlockSpec((1, C, hd), lambda b, h: (h, 0, 0)),  # Wv head slab
                pl.BlockSpec((1, hd, C), lambda b, h: (h, 0, 0)),  # Wproj head slab
                pl.BlockSpec((1, C), lambda b, h: (0, 0)),         # bproj
            ],
            out_specs=pl.BlockSpec((1, N, C), lambda b, h: (b, 0, 0)),
            scratch_shapes=[pltpu.VMEM((N, C), jnp.float32)],      # acc
        ),
        compiler_params=pltpu.CompilerParams(
            dimension_semantics=("parallel", "arbitrary")),
        cost_estimate=pl.CostEstimate(
            flops=flops,
            transcendentals=transcendentals,
            bytes_accessed=bytes_accessed),
    )(x_c, prepped["wq"], prepped["wk"], prepped["wv"], prepped["wo"],
      prepped["bproj"])

    return out, None   # prev stays None (res_score=False)


def _reference(x, params, *, num_heads, lora_r, lora_alpha):
    """Pure-JAX f32 reference mirroring the PyTorch forward (unmerged LoRA)."""
    B, N, C = x.shape
    hd = C // num_heads
    scale = hd ** (-0.5)
    lscale = lora_alpha / lora_r

    qkv = x @ params["wqkv"].T                              # (B, N, 3C)
    qkv = qkv.reshape(B, N, 3, num_heads, hd).transpose(2, 0, 3, 1, 4)
    q, k, v = qkv[0], qkv[1], qkv[2]                        # (B, H, N, hd)

    def adapter(xin, w1, w2):
        return (xin @ w1.T) @ w2.T * lscale

    q_delta = adapter(x, params["qa1"], params["qa2"]).reshape(
        B, N, num_heads, hd).transpose(0, 2, 1, 3)
    v_delta = adapter(x, params["va1"], params["va2"]).reshape(
        B, N, num_heads, hd).transpose(0, 2, 1, 3)
    q = q + q_delta
    v = v + v_delta

    attn = jax.nn.softmax(jnp.einsum("bhnd,bhmd->bhnm", q, k) * scale, axis=-1)
    ctx = jnp.einsum("bhnm,bhmd->bhnd", attn, v).transpose(0, 2, 1, 3).reshape(B, N, C)
    return ctx @ params["wproj"].T + params["bproj"][0]


if __name__ == "__main__":
    # Small, forward-consistent shapes.
    B, N, C = 2, 16, 64
    num_heads = 4
    lora_r, lora_alpha = 4, 128

    key = jax.random.PRNGKey(0)
    ks = jax.random.split(key, 8)

    # Deterministic synthetic parameters (shapes from LoraAttention.__init__).
    # PyTorch init zeroes q/v_proj_adapter2; small nonzero values are used so
    # the LoRA path is actually exercised numerically.
    params = {
        "wqkv":  jax.random.normal(ks[0], (3 * C, C), jnp.float32) * 0.05,
        "qa1":   jax.random.normal(ks[1], (lora_r, C), jnp.float32) * 0.02,
        "qa2":   jax.random.normal(ks[2], (C, lora_r), jnp.float32) * 0.02,
        "va1":   jax.random.normal(ks[3], (lora_r, C), jnp.float32) * 0.02,
        "va2":   jax.random.normal(ks[4], (C, lora_r), jnp.float32) * 0.02,
        "wproj": jax.random.normal(ks[5], (C, C), jnp.float32) * 0.05,
        "bproj": jax.random.normal(ks[6], (1, C), jnp.float32) * 0.05,
    }

    x = jax.random.normal(ks[7], (B, N, C), jnp.float32)

    # Host prep runs once per model (hoisted out of the forward hot path).
    prepped = prepare_lora_attention(params, num_heads=num_heads,
                                     lora_r=lora_r, lora_alpha=lora_alpha)

    out, prev = lora_attention(x, prepped)
    out = jax.block_until_ready(out)

    ref = _reference(x, params, num_heads=num_heads,
                     lora_r=lora_r, lora_alpha=lora_alpha)
    assert out.shape == (B, N, C)
    assert prev is None
    # bf16 operands / f32 accumulation + LoRA merged on host + approx
    # reciprocal => loosened tolerance vs the all-f32 reference.
    err = float(jnp.max(jnp.abs(out.astype(jnp.float32) - ref)))
    assert jnp.allclose(out.astype(jnp.float32), ref, atol=3e-2, rtol=3e-2), \
        f"mismatch vs reference (max abs err {err})"

    print("KERNEL_OK")
</pallas_src>

<mosaic_0001>
module attributes {stable_mosaic.version = 11 : i64} {
  func.func @_lora_attn_head_kernel(%arg0: i32, %arg1: i32, %arg2: memref<1x16x64xbf16, #tpu.memory_space<vmem>>, %arg3: memref<1x64x16xbf16, #tpu.memory_space<vmem>>, %arg4: memref<1x64x16xbf16, #tpu.memory_space<vmem>>, %arg5: memref<1x64x16xbf16, #tpu.memory_space<vmem>>, %arg6: memref<1x16x64xbf16, #tpu.memory_space<vmem>>, %arg7: memref<1x64xf32, #tpu.memory_space<vmem>>, %arg8: memref<1x16x64xf32, #tpu.memory_space<vmem>>, %arg9: memref<16x64xf32, #tpu.memory_space<vmem>>) attributes {dimension_semantics = [#tpu.dimension_semantics<parallel>, #tpu.dimension_semantics<arbitrary>], iteration_bounds = array<i64: 2, 4>, scalar_prefetch = 0 : i64, scratch_operands = 1 : i64, tpu.core_type = #tpu.core_type<tc>, window_params = [{transform_indices = @transform_0, window_bounds = array<i64: 1, 16, 64>}, {transform_indices = @transform_1, window_bounds = array<i64: 1, 64, 16>}, {transform_indices = @transform_2, window_bounds = array<i64: 1, 64, 16>}, {transform_indices = @transform_3, window_bounds = array<i64: 1, 64, 16>}, {transform_indices = @transform_4, window_bounds = array<i64: 1, 16, 64>}, {pipeline_mode = #tpu.pipeline_mode<synchronous>, transform_indices = @transform_5, window_bounds = array<i64: 1, 64>}, {transform_indices = @transform_6, window_bounds = array<i64: 1, 16, 64>}]} {
    %c0_i32 = arith.constant 0 : i32
    %0 = arith.cmpi eq, %arg1, %c0_i32 : i32
    %1 = arith.extui %0 : i1 to i32
    %c0_i32_0 = arith.constant 0 : i32
    %2 = arith.cmpi ne, %1, %c0_i32_0 : i32
    scf.if %2 {
      %c0_27 = arith.constant 0 : index
      %c0_28 = arith.constant 0 : index
      %40 = vector.load %arg7[%c0_27, %c0_28] : memref<1x64xf32, #tpu.memory_space<vmem>>, vector<1x64xf32>
      %41 = vector.shape_cast %40 : vector<1x64xf32> to vector<1x64xf32>
      %42 = vector.broadcast %41 : vector<1x64xf32> to vector<16x64xf32>
      %c0_29 = arith.constant 0 : index
      %c0_30 = arith.constant 0 : index
      %43 = vector.load %arg9[%c0_29, %c0_30] : memref<16x64xf32, #tpu.memory_space<vmem>>, vector<16x64xf32>
      tpu.vector_store %arg9[%c0_29, %c0_30], %42 {strides = array<i32>} : memref<16x64xf32, #tpu.memory_space<vmem>>, vector<16x64xf32>,
    } else {
    }
    %c0 = arith.constant 0 : index
    %c0_1 = arith.constant 0 : index
    %c0_2 = arith.constant 0 : index
    %3 = vector.load %arg2[%c0, %c0_1, %c0_2] : memref<1x16x64xbf16, #tpu.memory_space<vmem>>, vector<1x16x64xbf16>
    %4 = vector.shape_cast %3 : vector<1x16x64xbf16> to vector<16x64xbf16>
    %c0_3 = arith.constant 0 : index
    %c0_4 = arith.constant 0 : index
    %c0_5 = arith.constant 0 : index
    %5 = vector.load %arg3[%c0_3, %c0_4, %c0_5] : memref<1x64x16xbf16, #tpu.memory_space<vmem>>, vector<1x64x16xbf16>
    %6 = vector.shape_cast %5 : vector<1x64x16xbf16> to vector<64x16xbf16>
    %cst = arith.constant dense<0.000000e+00> : vector<16x16xf32>
    %7 = tpu.matmul %4, %6, %cst {dimension_numbers = #tpu.dot_dimension_numbers<[1], [0], [0], [1], [0, 0, 1, 1], [], []>} : vector<16x64xbf16>, vector<64x16xbf16>, vector<16x16xf32> -> vector<16x16xf32>
    %c0_6 = arith.constant 0 : index
    %c0_7 = arith.constant 0 : index
    %c0_8 = arith.constant 0 : index
    %8 = vector.load %arg4[%c0_6, %c0_7, %c0_8] : memref<1x64x16xbf16, #tpu.memory_space<vmem>>, vector<1x64x16xbf16>
    %9 = vector.shape_cast %8 : vector<1x64x16xbf16> to vector<64x16xbf16>
    %cst_9 = arith.constant dense<0.000000e+00> : vector<16x16xf32>
    %10 = tpu.matmul %4, %9, %cst_9 {dimension_numbers = #tpu.dot_dimension_numbers<[1], [0], [0], [1], [0, 0, 1, 1], [], []>} : vector<16x64xbf16>, vector<64x16xbf16>, vector<16x16xf32> -> vector<16x16xf32>
    %c0_10 = arith.constant 0 : index
    %c0_11 = arith.constant 0 : index
    %c0_12 = arith.constant 0 : index
    %11 = vector.load %arg5[%c0_10, %c0_11, %c0_12] : memref<1x64x16xbf16, #tpu.memory_space<vmem>>, vector<1x64x16xbf16>
    %12 = vector.shape_cast %11 : vector<1x64x16xbf16> to vector<64x16xbf16>
    %cst_13 = arith.constant dense<0.000000e+00> : vector<16x16xf32>
    %13 = tpu.matmul %4, %12, %cst_13 {dimension_numbers = #tpu.dot_dimension_numbers<[1], [0], [0], [1], [0, 0, 1, 1], [], []>} : vector<16x64xbf16>, vector<64x16xbf16>, vector<16x16xf32> -> vector<16x16xf32>
    %14 = arith.truncf %7 : vector<16x16xf32> to vector<16x16xbf16>
    %15 = arith.truncf %10 : vector<16x16xf32> to vector<16x16xbf16>
    %16 = arith.truncf %13 : vector<16x16xf32> to vector<16x16xbf16>
    %cst_14 = arith.constant dense<0.000000e+00> : vector<16x16xf32>
    %17 = tpu.matmul %14, %15, %cst_14 {dimension_numbers = #tpu.dot_dimension_numbers<[1], [1], [0], [0], [0, 0, 1, 0], [], []>} : vector<16x16xbf16>, vector<16x16xbf16>, vector<16x16xf32> -> vector<16x16xf32>
    %cst_15 = arith.constant dense<0xFF800000> : vector<16xf32>
    %18 = vector.multi_reduction <maximumf>, %17, %cst_15 [1] : vector<16x16xf32> to vector<16xf32>
    %19 = vector.shape_cast %18 : vector<16xf32> to vector<16x1xf32>
    %20 = vector.broadcast %19 : vector<16x1xf32> to vector<16x16xf32>
    %21 = arith.subf %17, %20 : vector<16x16xf32>
    %22 = math.exp %21 : vector<16x16xf32>
    %cst_16 = arith.constant dense<0.000000e+00> : vector<16xf32>
    %23 = vector.multi_reduction <add>, %22, %cst_16 [1] : vector<16x16xf32> to vector<16xf32>
    %24 = vector.shape_cast %23 : vector<16xf32> to vector<16x1xf32>
    %25 = tpu.reciprocal %24 {approx = true} : vector<16x1xf32> -> vector<16x1xf32>
    %26 = arith.truncf %22 : vector<16x16xf32> to vector<16x16xbf16>
    %cst_17 = arith.constant dense<0.000000e+00> : vector<16x16xf32>
    %27 = tpu.matmul %26, %16, %cst_17 {dimension_numbers = #tpu.dot_dimension_numbers<[1], [0], [0], [1], [0, 0, 1, 1], [], []>} : vector<16x16xbf16>, vector<16x16xbf16>, vector<16x16xf32> -> vector<16x16xf32>
    %28 = vector.broadcast %25 : vector<16x1xf32> to vector<16x16xf32>
    %29 = arith.mulf %27, %28 : vector<16x16xf32>
    %30 = arith.truncf %29 : vector<16x16xf32> to vector<16x16xbf16>
    %c0_18 = arith.constant 0 : index
    %c0_19 = arith.constant 0 : index
    %31 = vector.load %arg9[%c0_18, %c0_19] : memref<16x64xf32, #tpu.memory_space<vmem>>, vector<16x64xf32>
    %c0_20 = arith.constant 0 : index
    %c0_21 = arith.constant 0 : index
    %c0_22 = arith.constant 0 : index
    %32 = vector.load %arg6[%c0_20, %c0_21, %c0_22] : memref<1x16x64xbf16, #tpu.memory_space<vmem>>, vector<1x16x64xbf16>
    %33 = vector.shape_cast %32 : vector<1x16x64xbf16> to vector<16x64xbf16>
    %cst_23 = arith.constant dense<0.000000e+00> : vector<16x64xf32>
    %34 = tpu.matmul %30, %33, %cst_23 {dimension_numbers = #tpu.dot_dimension_numbers<[1], [0], [0], [1], [0, 0, 1, 1], [], []>} : vector<16x16xbf16>, vector<16x64xbf16>, vector<16x64xf32> -> vector<16x64xf32>
    %35 = arith.addf %31, %34 : vector<16x64xf32>
    %c0_24 = arith.constant 0 : index
    %c0_25 = arith.constant 0 : index
    %36 = vector.load %arg9[%c0_24, %c0_25] : memref<16x64xf32, #tpu.memory_space<vmem>>, vector<16x64xf32>
    tpu.vector_store %arg9[%c0_24, %c0_25], %35 {strides = array<i32>} : memref<16x64xf32, #tpu.memory_space<vmem>>, vector<16x64xf32>,
    %c3_i32 = arith.constant 3 : i32
    %37 = arith.cmpi eq, %arg1, %c3_i32 : i32
    %38 = arith.extui %37 : i1 to i32
    %c0_i32_26 = arith.constant 0 : i32
    %39 = arith.cmpi ne, %38, %c0_i32_26 : i32
    scf.if %39 {
      %c0_27 = arith.constant 0 : index
      %c0_28 = arith.constant 0 : index
      %40 = vector.load %arg9[%c0_27, %c0_28] : memref<16x64xf32, #tpu.memory_space<vmem>>, vector<16x64xf32>
      %c0_29 = arith.constant 0 : index
      %c0_30 = arith.constant 0 : index
      %c0_31 = arith.constant 0 : index
      %41 = vector.load %arg8[%c0_29, %c0_30, %c0_31] : memref<1x16x64xf32, #tpu.memory_space<vmem>>, vector<1x16x64xf32>
      %42 = vector.shape_cast %41 : vector<1x16x64xf32> to vector<16x64xf32>
      %43 = vector.shape_cast %40 : vector<16x64xf32> to vector<1x16x64xf32>
      tpu.vector_store %arg8[%c0_29, %c0_30, %c0_31], %43 {strides = array<i32>} : memref<1x16x64xf32, #tpu.memory_space<vmem>>, vector<1x16x64xf32>,
    } else {
    }
    return
  }
  func.func @transform_0(%arg0: i32, %arg1: i32) -> (i32, i32, i32) {
    %c0_i32 = arith.constant 0 : i32
    %c0_i32_0 = arith.constant 0 : i32
    %c0_i32_1 = arith.constant 0 : i32
    return %arg0, %c0_i32, %c0_i32_0 : i32, i32, i32
  }
  func.func @transform_1(%arg0: i32, %arg1: i32) -> (i32, i32, i32) {
    %c0_i32 = arith.constant 0 : i32
    %c0_i32_0 = arith.constant 0 : i32
    %c0_i32_1 = arith.constant 0 : i32
    return %arg1, %c0_i32, %c0_i32_0 : i32, i32, i32
  }
  func.func @transform_2(%arg0: i32, %arg1: i32) -> (i32, i32, i32) {
    %c0_i32 = arith.constant 0 : i32
    %c0_i32_0 = arith.constant 0 : i32
    %c0_i32_1 = arith.constant 0 : i32
    return %arg1, %c0_i32, %c0_i32_0 : i32, i32, i32
  }
  func.func @transform_3(%arg0: i32, %arg1: i32) -> (i32, i32, i32) {
    %c0_i32 = arith.constant 0 : i32
    %c0_i32_0 = arith.constant 0 : i32
    %c0_i32_1 = arith.constant 0 : i32
    return %arg1, %c0_i32, %c0_i32_0 : i32, i32, i32
  }
  func.func @transform_4(%arg0: i32, %arg1: i32) -> (i32, i32, i32) {
    %c0_i32 = arith.constant 0 : i32
    %c0_i32_0 = arith.constant 0 : i32
    %c0_i32_1 = arith.constant 0 : i32
    return %arg1, %c0_i32, %c0_i32_0 : i32, i32, i32
  }
  func.func @transform_5(%arg0: i32, %arg1: i32) -> (i32, i32) {
    %c0_i32 = arith.constant 0 : i32
    %c0_i32_0 = arith.constant 0 : i32
    %c0_i32_1 = arith.constant 0 : i32
    return %c0_i32, %c0_i32_0 : i32, i32
  }
  func.func @transform_6(%arg0: i32, %arg1: i32) -> (i32, i32, i32) {
    %c0_i32 = arith.constant 0 : i32
    %c0_i32_0 = arith.constant 0 : i32
    %c0_i32_1 = arith.constant 0 : i32
    return %arg0, %c0_i32, %c0_i32_0 : i32, i32, i32
  }
}

</mosaic_0001>

<llo_original>
// kernel: tpu_custom_call.1
$region0: #{tpu_custom_call.1}
  #allocation0 [shape = 'u32[]', space=smem, size = 0x4, offset = 0x4, fixed_abs, tag = 'smem constant byte address 0x4 - core index']
  #allocation1 [shape = 'u32[144,128]{1,0:T(1,128)}', space=vmem, size = 0x12000, scoped, tag = 'internal scratch']
  #allocation2 [shape = 'f32[16,64]{1,0:T(8,128)}', space=vmem, size = 0x2000, scoped, tag = 'scratch operand']
  %s0 = inlined_call_operand.vmem [shape: bf16[2,16,64], index: 0, kind: input, shape index: {}]
  %s1 = inlined_call_operand.vmem [shape: bf16[4,64,16], index: 1, kind: input, shape index: {}]
  %s2 = inlined_call_operand.vmem [shape: bf16[4,64,16], index: 2, kind: input, shape index: {}]
  %s3 = inlined_call_operand.vmem [shape: bf16[4,64,16], index: 3, kind: input, shape index: {}]
  %s4 = inlined_call_operand.vmem [shape: bf16[4,16,64], index: 4, kind: input, shape index: {}]
  %s5 = inlined_call_operand.vmem [shape: f32[1,64], index: 5, kind: input, shape index: {}]
  %s6 = inlined_call_operand.hbm [shape: f32[2,16,64], index: 6, kind: output, shape index: {}]
  %s7 = sld [smem:[#allocation0]]
  $region65: #{tpu_custom_call.1} parent=0
    _
  %s9 = ssub.s32 1, %s7
  %s10 = scalar_select 0, %s9, %s7
  $region1: #{tpu_custom_call.1} parent=0
    #allocation3 [shape = 'u8[16384]{0}', space=vmem, size = 0x4000, scoped, tag = 'output window, operand 0']
    #allocation4 [shape = 's32[2]{0}', space=sflag, size = 0x8, scoped, tag = 'scoped memory for tpu_custom_call.1']
    %11 = vsyncpa [#allocation4], 0
    %s12 = scalar_lea.sflag [#allocation4], 1
    %13 = vsyncpa %s12, 0
    loop: start=0, step=1, limit=10
    $region2: #{tpu_custom_call.1} parent=1 // loop_pre_header
      _
    $region3: #{tpu_custom_call.1} parent=1 // loop_header
      %s15 = sphi 0, %s19
      %p16 = scmp.ge.s32.totalorder %s15, 10
      %s22 = sphi 0, %s34
      %s23 = sphi 0, %s30
      %s24 = sphi 0, %s22
      %s25 = sphi 0, %s23
      %s26 = sphi 0, %s24
      %s27 = sphi 0, %s25
      %s37 = sphi 0, %s39
      %s40 = sphi 0, %s37
      %s41 = sphi 0, %s40
      %s57 = sphi 0, %s41
      %s63 = sphi 0, %s65
      %s66 = sphi 0, %s63
      %s67 = sphi 0, %s66
      %s83 = sphi 0, %s67
      %s89 = sphi 0, %s91
      %s92 = sphi 0, %s89
      %s93 = sphi 0, %s92
      %s109 = sphi 0, %s93
      %s115 = sphi 0, %s117
      %s118 = sphi 0, %s115
      %s119 = sphi 0, %s118
      %s135 = sphi 0, %s119
      %s141 = sphi 0, %s143
      %s144 = sphi 0, %s141
      %s145 = sphi 0, %s144
      %s161 = sphi 0, %s145
      %s165 = sphi 0, %s165
      %s167 = sphi 0, %s165
      %s168 = sphi 0, %s167
      %s182 = sphi 0, %s168
      %s188 = sphi 0, %s190
      %s191 = sphi 0, %s188
      %s192 = sphi 0, %s191
      %s208 = sphi 0, %s192
    $region4: #{tpu_custom_call.1} parent=1 // loop_header_branch
      %18 = sbr.rel (%p16) target = $region8
    $region5: #{tpu_custom_call.1} parent=1 // loop_body
      %s20 = ssub.s32 %s15, 1
      %s21 = ssub.s32 %s15, 2
      %s28 = sadd.s32 1, %s23
      %p29 = scmp.ge.s32.totalorder %s28, 4
      %s30 = scalar_select %p29, 0, %s28
      %s31 = sadd.s32 1, %s22
      %s32 = scalar_select %p29, %s31, %s22
      %p33 = scmp.ge.s32.totalorder %s32, 2
      %s34 = scalar_select %p33, 0, %s32
      %s35 = ssub.s32 %s22, %s34
      %p36 = scmp.eq.s32.totalorder %s35, 0
      %s38 = sadd.s32 %s37, 1
      %s39 = scalar_select %p36, %s37, %s38
      %p42 = pneg %p36
      %p43 = scmp.eq.s32.totalorder %s15, 7
      %p44 = por %p42, %p43
      %p45 = scmp.ne.s32.totalorder %s37, %s40
      %p46 = scmp.eq.s32.totalorder %s15, 0
      %p47 = por %p45, %p46
      %p48 = scmp.ne.s32.totalorder %s37, %s40
      %p49 = scmp.eq.s32.totalorder %s20, 7
      %p50 = por %p48, %p49
      %p51 = scmp.ne.s32.totalorder %s40, %s41
      %p52 = scmp.eq.s32.totalorder %s20, 0
      %p53 = por %p51, %p52
      %p54 = scmp.ne.s32.totalorder %s40, %s41
      %p55 = scmp.eq.s32.totalorder %s21, 7
      %p56 = por %p54, %p55
      %p58 = scmp.ne.s32.totalorder %s41, %s57
      %p59 = scmp.eq.s32.totalorder %s21, 0
      %p60 = por %p58, %p59
      %s61 = ssub.s32 %s23, %s30
      %p62 = scmp.eq.s32.totalorder %s61, 0
      %s64 = sadd.s32 %s63, 1
      %s65 = scalar_select %p62, %s63, %s64
      %p68 = pneg %p62
      %p69 = scmp.eq.s32.totalorder %s15, 7
      %p70 = por %p68, %p69
      %p71 = scmp.ne.s32.totalorder %s63, %s66
      %p72 = scmp.eq.s32.totalorder %s15, 0
      %p73 = por %p71, %p72
      %p74 = scmp.ne.s32.totalorder %s63, %s66
      %p75 = scmp.eq.s32.totalorder %s20, 7
      %p76 = por %p74, %p75
      %p77 = scmp.ne.s32.totalorder %s66, %s67
      %p78 = scmp.eq.s32.totalorder %s20, 0
      %p79 = por %p77, %p78
      %p80 = scmp.ne.s32.totalorder %s66, %s67
      %p81 = scmp.eq.s32.totalorder %s21, 7
      %p82 = por %p80, %p81
      %p84 = scmp.ne.s32.totalorder %s67, %s83
      %p85 = scmp.eq.s32.totalorder %s21, 0
      %p86 = por %p84, %p85
      %s87 = ssub.s32 %s23, %s30
      %p88 = scmp.eq.s32.totalorder %s87, 0
      %s90 = sadd.s32 %s89, 1
      %s91 = scalar_select %p88, %s89, %s90
      %p94 = pneg %p88
      %p95 = scmp.eq.s32.totalorder %s15, 7
      %p96 = por %p94, %p95
      %p97 = scmp.ne.s32.totalorder %s89, %s92
      %p98 = scmp.eq.s32.totalorder %s15, 0
      %p99 = por %p97, %p98
      %p100 = scmp.ne.s32.totalorder %s89, %s92
      %p101 = scmp.eq.s32.totalorder %s20, 7
      %p102 = por %p100, %p101
      %p103 = scmp.ne.s32.totalorder %s92, %s93
      %p104 = scmp.eq.s32.totalorder %s20, 0
      %p105 = por %p103, %p104
      %p106 = scmp.ne.s32.totalorder %s92, %s93
      %p107 = scmp.eq.s32.totalorder %s21, 7
      %p108 = por %p106, %p107
      %p110 = scmp.ne.s32.totalorder %s93, %s109
      %p111 = scmp.eq.s32.totalorder %s21, 0
      %p112 = por %p110, %p111
      %s113 = ssub.s32 %s23, %s30
      %p114 = scmp.eq.s32.totalorder %s113, 0
      %s116 = sadd.s32 %s115, 1
      %s117 = scalar_select %p114, %s115, %s116
      %p120 = pneg %p114
      %p121 = scmp.eq.s32.totalorder %s15, 7
      %p122 = por %p120, %p121
      %p123 = scmp.ne.s32.totalorder %s115, %s118
      %p124 = scmp.eq.s32.totalorder %s15, 0
      %p125 = por %p123, %p124
      %p126 = scmp.ne.s32.totalorder %s115, %s118
      %p127 = scmp.eq.s32.totalorder %s20, 7
      %p128 = por %p126, %p127
      %p129 = scmp.ne.s32.totalorder %s118, %s119
      %p130 = scmp.eq.s32.totalorder %s20, 0
      %p131 = por %p129, %p130
      %p132 = scmp.ne.s32.totalorder %s118, %s119
      %p133 = scmp.eq.s32.totalorder %s21, 7
      %p134 = por %p132, %p133
      %p136 = scmp.ne.s32.totalorder %s119, %s135
      %p137 = scmp.eq.s32.totalorder %s21, 0
      %p138 = por %p136, %p137
      %s139 = ssub.s32 %s23, %s30
      %p140 = scmp.eq.s32.totalorder %s139, 0
      %s142 = sadd.s32 %s141, 1
      %s143 = scalar_select %p140, %s141, %s142
      %p146 = pneg %p140
      %p147 = scmp.eq.s32.totalorder %s15, 7
      %p148 = por %p146, %p147
      %p149 = scmp.ne.s32.totalorder %s141, %s144
      %p150 = scmp.eq.s32.totalorder %s15, 0
      %p151 = por %p149, %p150
      %p152 = scmp.ne.s32.totalorder %s141, %s144
      %p153 = scmp.eq.s32.totalorder %s20, 7
      %p154 = por %p152, %p153
      %p155 = scmp.ne.s32.totalorder %s144, %s145
      %p156 = scmp.eq.s32.totalorder %s20, 0
      %p157 = por %p155, %p156
      %p158 = scmp.ne.s32.totalorder %s144, %s145
      %p159 = scmp.eq.s32.totalorder %s21, 7
      %p160 = por %p158, %p159
      %p162 = scmp.ne.s32.totalorder %s145, %s161
      %p163 = scmp.eq.s32.totalorder %s21, 0
      %p164 = por %p162, %p163
      %s166 = sadd.s32 %s165, 1
      %p169 = scmp.eq.s32.totalorder %s15, 7
      %p170 = scmp.ne.s32.totalorder %s165, %s167
      %p171 = scmp.eq.s32.totalorder %s15, 0
      %p172 = por %p170, %p171
      %p173 = scmp.ne.s32.totalorder %s165, %s167
      %p174 = scmp.eq.s32.totalorder %s20, 7
      %p175 = por %p173, %p174
      %p176 = scmp.ne.s32.totalorder %s167, %s168
      %p177 = scmp.eq.s32.totalorder %s20, 0
      %p178 = por %p176, %p177
      %p179 = scmp.ne.s32.totalorder %s167, %s168
      %p180 = scmp.eq.s32.totalorder %s21, 7
      %p181 = por %p179, %p180
      %p183 = scmp.ne.s32.totalorder %s168, %s182
      %p184 = scmp.eq.s32.totalorder %s21, 0
      %p185 = por %p183, %p184
      %s186 = ssub.s32 %s22, %s34
      %p187 = scmp.eq.s32.totalorder %s186, 0
      %s189 = sadd.s32 %s188, 1
      %s190 = scalar_select %p187, %s188, %s189
      %p193 = pneg %p187
      %p194 = scmp.eq.s32.totalorder %s15, 7
      %p195 = por %p193, %p194
      %p196 = scmp.ne.s32.totalorder %s188, %s191
      %p197 = scmp.eq.s32.totalorder %s15, 0
      %p198 = por %p196, %p197
      %p199 = scmp.ne.s32.totalorder %s188, %s191
      %p200 = scmp.eq.s32.totalorder %s20, 7
      %p201 = por %p199, %p200
      %p202 = scmp.ne.s32.totalorder %s191, %s192
      %p203 = scmp.eq.s32.totalorder %s20, 0
      %p204 = por %p202, %p203
      %p205 = scmp.ne.s32.totalorder %s191, %s192
      %p206 = scmp.eq.s32.totalorder %s21, 7
      %p207 = por %p205, %p206
      %p209 = scmp.ne.s32.totalorder %s192, %s208
      %p210 = scmp.eq.s32.totalorder %s21, 0
      %p211 = por %p209, %p210
      %p212 = scmp.le.s32.totalorder 1, %s15
      %p213 = scmp.lt.s32.totalorder %s15, 9
      %p214 = pnand %p212, %p213
      %p215 = pneg %p214
      // Predicated region
      $region9: #{tpu_custom_call.1} parent=5 // pred_check
        _
      $region10: #{tpu_custom_call.1} parent=5 // pred_check_branch
        %217 = sbr.rel (%p214) target = $region12
      $region11: #{tpu_custom_call.1} parent=5 // pred_region
        %s218 = ssub.s32 %s15, 1
        // Predicated region
        $region13: #{tpu_custom_call.1} parent=11 // pred_check
          %p219 = pneg %p178
        $region14: #{tpu_custom_call.1} parent=11 // pred_check_branch
          %221 = sbr.rel (%p219) target = $region16
        $region15: #{tpu_custom_call.1} parent=11 // pred_region
          _
        $region16: #{tpu_custom_call.1} parent=11 // pred_fallthru
          _
      $region12: #{tpu_custom_call.1} parent=5 // pred_fallthru
        _
      %p222 = scmp.lt.s32.totalorder %s15, 8
      // Predicated region
      $region17: #{tpu_custom_call.1} parent=5 // pred_check
        %p223 = pneg %p222
      $region18: #{tpu_custom_call.1} parent=5 // pred_check_branch
        %225 = sbr.rel (%p223) target = $region20
      $region19: #{tpu_custom_call.1} parent=5 // pred_region
        // Predicated region
        $region21: #{tpu_custom_call.1} parent=19 // pred_check
          %p226 = pneg %p47
        $region22: #{tpu_custom_call.1} parent=19 // pred_check_branch
          %228 = sbr.rel (%p226) target = $region24
        $region23: #{tpu_custom_call.1} parent=19 // pred_region
          %p229 = scmp.lt.s32.totalorder %s22, 1
          %s230 = scalar_select %p229, %s22, 1
          %s231 = smul.addr %s230, 2
          %s232 = smul.addr %s231, 4
          %s233 = scalar_lea.vmem %s0, %s232
        $region24: #{tpu_custom_call.1} parent=19 // pred_fallthru
          _
        // Predicated region
        $region25: #{tpu_custom_call.1} parent=19 // pred_check
          %p234 = pneg %p73
        $region26: #{tpu_custom_call.1} parent=19 // pred_check_branch
          %236 = sbr.rel (%p234) target = $region28
        $region27: #{tpu_custom_call.1} parent=19 // pred_region
          %p237 = scmp.lt.s32.totalorder %s23, 3
          %s238 = scalar_select %p237, %s23, 3
          %s239 = smul.addr %s238, 8
          %s240 = smul.addr %s239, 4
          %s241 = scalar_lea.vmem %s1, %s240
        $region28: #{tpu_custom_call.1} parent=19 // pred_fallthru
          _
        // Predicated region
        $region29: #{tpu_custom_call.1} parent=19 // pred_check
          %p242 = pneg %p99
        $region30: #{tpu_custom_call.1} parent=19 // pred_check_branch
          %244 = sbr.rel (%p242) target = $region32
        $region31: #{tpu_custom_call.1} parent=19 // pred_region
          %p245 = scmp.lt.s32.totalorder %s23, 3
          %s246 = scalar_select %p245, %s23, 3
          %s247 = smul.addr %s246, 8
          %s248 = smul.addr %s247, 4
          %s249 = scalar_lea.vmem %s2, %s248
        $region32: #{tpu_custom_call.1} parent=19 // pred_fallthru
          _
        // Predicated region
        $region33: #{tpu_custom_call.1} parent=19 // pred_check
          %p250 = pneg %p125
        $region34: #{tpu_custom_call.1} parent=19 // pred_check_branch
          %252 = sbr.rel (%p250) target = $region36
        $region35: #{tpu_custom_call.1} parent=19 // pred_region
          %p253 = scmp.lt.s32.totalorder %s23, 3
          %s254 = scalar_select %p253, %s23, 3
          %s255 = smul.addr %s254, 8
          %s256 = smul.addr %s255, 4
          %s257 = scalar_lea.vmem %s3, %s256
        $region36: #{tpu_custom_call.1} parent=19 // pred_fallthru
          _
        // Predicated region
        $region37: #{tpu_custom_call.1} parent=19 // pred_check
          %p258 = pneg %p151
        $region38: #{tpu_custom_call.1} parent=19 // pred_check_branch
          %260 = sbr.rel (%p258) target = $region40
        $region39: #{tpu_custom_call.1} parent=19 // pred_region
          %p261 = scmp.lt.s32.totalorder %s23, 3
          %s262 = scalar_select %p261, %s23, 3
          %s263 = smul.addr %s262, 2
          %s264 = smul.addr %s263, 4
          %s265 = scalar_lea.vmem %s4, %s264
        $region40: #{tpu_custom_call.1} parent=19 // pred_fallthru
          _
      $region20: #{tpu_custom_call.1} parent=5 // pred_fallthru
        _
      %p266 = scmp.le.s32.totalorder 1, %s15
      %p267 = scmp.lt.s32.totalorder %s15, 9
      %p268 = pnand %p266, %p267
      %p269 = pneg %p268
      // Predicated region
      $region41: #{tpu_custom_call.1} parent=5 // pred_check
        _
      $region42: #{tpu_custom_call.1} parent=5 // pred_check_branch
        %271 = sbr.rel (%p268) target = $region44
      $region43: #{tpu_custom_call.1} parent=5 // pred_region
        %s272 = ssub.s32 %s15, 1
        %p273 = scmp.lt.s32.totalorder %s24, 1
        %s274 = scalar_select %p273, %s24, 1
        %s275 = smul.addr %s274, 2
        %s276 = smul.addr %s275, 4
        %s277 = scalar_lea.vmem %s0, %s276
        %p278 = pneg %p53
        %p279 = pneg %p50
        %p280 = scmp.lt.s32.totalorder %s25, 3
        %s281 = scalar_select %p280, %s25, 3
        %s282 = smul.addr %s281, 8
        %s283 = smul.addr %s282, 4
        %s284 = scalar_lea.vmem %s1, %s283
        %p285 = pneg %p79
        %p286 = pneg %p76
        %p287 = scmp.lt.s32.totalorder %s25, 3
        %s288 = scalar_select %p287, %s25, 3
        %s289 = smul.addr %s288, 8
        %s290 = smul.addr %s289, 4
        %s291 = scalar_lea.vmem %s2, %s290
        %p292 = pneg %p105
        %p293 = pneg %p102
        %p294 = scmp.lt.s32.totalorder %s25, 3
        %s295 = scalar_select %p294, %s25, 3
        %s296 = smul.addr %s295, 8
        %s297 = smul.addr %s296, 4
        %s298 = scalar_lea.vmem %s3, %s297
        %p299 = pneg %p131
        %p300 = pneg %p128
        %p301 = scmp.lt.s32.totalorder %s25, 3
        %s302 = scalar_select %p301, %s25, 3
        %s303 = smul.addr %s302, 2
        %s304 = smul.addr %s303, 4
        %s305 = scalar_lea.vmem %s4, %s304
        %p306 = pneg %p157
        %p307 = pneg %p154
        %p308 = pneg %p178
        %p309 = pneg %p175
        %p310 = pneg %p204
        %p311 = pneg %p201
        %s312 = sand.u32 %s191, 1
        %s313 = scalar_lea.sflag [#allocation4], %s312
        %s314 = sand.u32 %s191, 1
        %s315 = smul.addr %s314, 16
        %s316 = scalar_lea.vmem [#allocation3], %s315
        %p317 = scmp.lt.s32.totalorder %s24, 1
        %s318 = scalar_select %p317, %s24, 1
        %s319 = smul.addr %s318, 2
        %s320 = smul.addr %s319, 4
        %s321 = scalar_lea.vmem %s0, %s320
        %p322 = scmp.lt.s32.totalorder %s25, 3
        %s323 = scalar_select %p322, %s25, 3
        %s324 = smul.addr %s323, 8
        %s325 = smul.addr %s324, 4
        %s326 = scalar_lea.vmem %s1, %s325
        %p327 = scmp.lt.s32.totalorder %s25, 3
        %s328 = scalar_select %p327, %s25, 3
        %s329 = smul.addr %s328, 8
        %s330 = smul.addr %s329, 4
        %s331 = scalar_lea.vmem %s2, %s330
        %p332 = scmp.lt.s32.totalorder %s25, 3
        %s333 = scalar_select %p332, %s25, 3
        %s334 = smul.addr %s333, 8
        %s335 = smul.addr %s334, 4
        %s336 = scalar_lea.vmem %s3, %s335
        %p337 = scmp.lt.s32.totalorder %s25, 3
        %s338 = scalar_select %p337, %s25, 3
        %s339 = smul.addr %s338, 2
        %s340 = smul.addr %s339, 4
        %s341 = scalar_lea.vmem %s4, %s340
        %p343 = scmp.eq.s32.totalorder %s25, 0
        // Predicated region
        $region45: #{tpu_custom_call.1} parent=43 // pred_check
          %p344 = pneg %p343
        $region46: #{tpu_custom_call.1} parent=43 // pred_check_branch
          %346 = sbr.rel (%p344) target = $region48
        $region47: #{tpu_custom_call.1} parent=43 // pred_region
          %v347 = vld [vmem:[%s5] sm:$0x1]
          %v349 = vlaneseq
          %v350 = vshrl.u32 %v349, 7
          %v351 = vsub.s32 0, %v350
          %v352 = vrot.slane %v347, %v351
          %vm354 = vcmask 523264
          %355 = vst.msk [vmem:[#allocation2] sm:$0xff] %vm354, %v352
          %356 = vst.msk [vmem:[#allocation2 + $0x8] sm:$0xff] %vm354, %v352
        $region48: #{tpu_custom_call.1} parent=43 // pred_fallthru
          _
        %v357 = vld [vmem:[%s321] sm:$0xf]
        %v358 = vld [vmem:[%s321 + $0x4] sm:$0xf]
        %v359 = vld [vmem:[%s326] sm:$0xf]
        %v360 = vld [vmem:[%s326 + $0x4] sm:$0xf]
        %v361 = vld [vmem:[%s326 + $0x8] sm:$0xf]
        %v362 = vld [vmem:[%s326 + $0xc] sm:$0xf]
        %v363 = vld [vmem:[%s326 + $0x10] sm:$0xf]
        %v364 = vld [vmem:[%s326 + $0x14] sm:$0xf]
        %v365 = vld [vmem:[%s326 + $0x18] sm:$0xf]
        %v366 = vld [vmem:[%s326 + $0x1c] sm:$0xf]
        %v369 = vunpack.c.l.b16 %v357
        %v370 = vunpack.c.l.b16 %v358
        %v371 = vpack.c.b16 %v370, %v369
        %v380 = vunpack.c.l.b16 %v359
        %v381 = vunpack.c.l.b16 %v360
        %v382 = vunpack.c.l.b16 %v361
        %v383 = vunpack.c.l.b16 %v362
        %v384 = vunpack.c.l.b16 %v363
        %v385 = vunpack.c.l.b16 %v364
        %v386 = vunpack.c.l.b16 %v365
        %v387 = vunpack.c.l.b16 %v366
        %v388 = vpack.c.b16 %v381, %v380
        %v389 = vpack.c.b16 %v383, %v382
        %v390 = vpack.c.b16 %v385, %v384
        %v391 = vpack.c.b16 %v387, %v386
        %vm396 = vcmask 523264
        %v398 = vsel %vm396, %v371, 0
        %400 = vmatprep.subr.bf16.mxu0 0
        %401 = vmatpush1.bf16.msra.mxu0 %v388
        %402 = vmatprep.subr.bf16.mxu0 0
        %403 = vmatpush1.bf16.msra.mxu0 %v389
        %404 = vmatprep.subr.bf16.mxu0 0
        %405 = vmatpush1.bf16.msra.mxu0 %v390
        %406 = vmatprep.subr.bf16.mxu0 0
        %407 = vmatpush1.bf16.msra.mxu0 %v391
        %408 = vmatprep.subr.bf16.mxu0 0
        %409 = vmatpush1.bf16.msra.mxu0 0
        %410 = vmatprep.subr.bf16.mxu0 0
        %411 = vmatpush1.bf16.msra.mxu0 0
        %412 = vmatprep.subr.bf16.mxu0 0
        %413 = vmatpush1.bf16.msra.mxu0 0
        %414 = vmatprep.subr.bf16.mxu0 0
        %415 = vmatpush1.bf16.msra.mxu0 0
        %416 = vmatprep.subr.bf16.mxu0 0
        %417 = vmatpush1.bf16.msra.mxu0 0
        %418 = vmatprep.subr.bf16.mxu0 0
        %419 = vmatpush1.bf16.msra.mxu0 0
        %420 = vmatprep.subr.bf16.mxu0 0
        %421 = vmatpush1.bf16.msra.mxu0 0
        %422 = vmatprep.subr.bf16.mxu0 0
        %423 = vmatpush1.bf16.msra.mxu0 0
        %424 = vmatprep.subr.bf16.mxu0 0
        %425 = vmatpush1.bf16.msra.mxu0 0
        %426 = vmatprep.subr.bf16.mxu0 0
        %427 = vmatpush1.bf16.msra.mxu0 0
        %428 = vmatprep.subr.bf16.mxu0 0
        %429 = vmatpush1.bf16.msra.mxu0 0
        %430 = vmatprep.subr.bf16.mxu0 0
        %431 = vmatpush1.bf16.msra.mxu0 0
        %432 = vmatprep.mubr.bf16.mxu0 0
        %433 = vmatmul.mubr.bf16.gmra.mrb[0].mxu0 %v398
        %v434 = vpop.f32.mrb[0].mxu0
        %v435 = vadd.f32 0.0, %v434
        %v436 = vpop.f32.mrb[0].mxu0
        %v437 = vpop.f32.mrb[0].mxu0
        %v438 = vadd.f32 0.0, %v437
        %v439 = vpop.f32.mrb[0].mxu0
        %440 = vdwg.mxu0
        %v441 = vld [vmem:[%s331] sm:$0xf]
        %v442 = vld [vmem:[%s331 + $0x4] sm:$0xf]
        %v443 = vld [vmem:[%s331 + $0x8] sm:$0xf]
        %v444 = vld [vmem:[%s331 + $0xc] sm:$0xf]
        %v445 = vld [vmem:[%s331 + $0x10] sm:$0xf]
        %v446 = vld [vmem:[%s331 + $0x14] sm:$0xf]
        %v447 = vld [vmem:[%s331 + $0x18] sm:$0xf]
        %v448 = vld [vmem:[%s331 + $0x1c] sm:$0xf]
        %v457 = vunpack.c.l.b16 %v441
        %v458 = vunpack.c.l.b16 %v442
        %v459 = vunpack.c.l.b16 %v443
        %v460 = vunpack.c.l.b16 %v444
        %v461 = vunpack.c.l.b16 %v445
        %v462 = vunpack.c.l.b16 %v446
        %v463 = vunpack.c.l.b16 %v447
        %v464 = vunpack.c.l.b16 %v448
        %v465 = vpack.c.b16 %v458, %v457
        %v466 = vpack.c.b16 %v460, %v459
        %v467 = vpack.c.b16 %v462, %v461
        %v468 = vpack.c.b16 %v464, %v463
        %473 = vmatprep.subr.bf16.mxu0 0
        %474 = vmatpush1.bf16.msra.mxu0 %v465
        %475 = vmatprep.subr.bf16.mxu0 0
        %476 = vmatpush1.bf16.msra.mxu0 %v466
        %477 = vmatprep.subr.bf16.mxu0 0
        %478 = vmatpush1.bf16.msra.mxu0 %v467
        %479 = vmatprep.subr.bf16.mxu0 0
        %480 = vmatpush1.bf16.msra.mxu0 %v468
        %481 = vmatprep.subr.bf16.mxu0 0
        %482 = vmatpush1.bf16.msra.mxu0 0
        %483 = vmatprep.subr.bf16.mxu0 0
        %484 = vmatpush1.bf16.msra.mxu0 0
        %485 = vmatprep.subr.bf16.mxu0 0
        %486 = vmatpush1.bf16.msra.mxu0 0
        %487 = vmatprep.subr.bf16.mxu0 0
        %488 = vmatpush1.bf16.msra.mxu0 0
        %489 = vmatprep.subr.bf16.mxu0 0
        %490 = vmatpush1.bf16.msra.mxu0 0
        %491 = vmatprep.subr.bf16.mxu0 0
        %492 = vmatpush1.bf16.msra.mxu0 0
        %493 = vmatprep.subr.bf16.mxu0 0
        %494 = vmatpush1.bf16.msra.mxu0 0
        %495 = vmatprep.subr.bf16.mxu0 0
        %496 = vmatpush1.bf16.msra.mxu0 0
        %497 = vmatprep.subr.bf16.mxu0 0
        %498 = vmatpush1.bf16.msra.mxu0 0
        %499 = vmatprep.subr.bf16.mxu0 0
        %500 = vmatpush1.bf16.msra.mxu0 0
        %501 = vmatprep.subr.bf16.mxu0 0
        %502 = vmatpush1.bf16.msra.mxu0 0
        %503 = vmatprep.subr.bf16.mxu0 0
        %504 = vmatpush1.bf16.msra.mxu0 0
        %505 = vmatprep.mubr.bf16.mxu0 0
        %506 = vmatmul.mubr.bf16.gmra.mrb[0].mxu0 %v398
        %v507 = vpop.f32.mrb[0].mxu0
        %v508 = vadd.f32 0.0, %v507
        %v509 = vpop.f32.mrb[0].mxu0
        %v510 = vpop.f32.mrb[0].mxu0
        %v511 = vadd.f32 0.0, %v510
        %v512 = vpop.f32.mrb[0].mxu0
        %513 = vdwg.mxu0
        %v514 = vld [vmem:[%s336] sm:$0xf]
        %v515 = vld [vmem:[%s336 + $0x4] sm:$0xf]
        %v516 = vld [vmem:[%s336 + $0x8] sm:$0xf]
        %v517 = vld [vmem:[%s336 + $0xc] sm:$0xf]
        %v518 = vld [vmem:[%s336 + $0x10] sm:$0xf]
        %v519 = vld [vmem:[%s336 + $0x14] sm:$0xf]
        %v520 = vld [vmem:[%s336 + $0x18] sm:$0xf]
        %v521 = vld [vmem:[%s336 + $0x1c] sm:$0xf]
        %v530 = vunpack.c.l.b16 %v514
        %v531 = vunpack.c.l.b16 %v515
        %v532 = vunpack.c.l.b16 %v516
        %v533 = vunpack.c.l.b16 %v517
        %v534 = vunpack.c.l.b16 %v518
        %v535 = vunpack.c.l.b16 %v519
        %v536 = vunpack.c.l.b16 %v520
        %v537 = vunpack.c.l.b16 %v521
        %v538 = vpack.c.b16 %v531, %v530
        %v539 = vpack.c.b16 %v533, %v532
        %v540 = vpack.c.b16 %v535, %v534
        %v541 = vpack.c.b16 %v537, %v536
        %546 = vmatprep.subr.bf16.mxu0 0
        %547 = vmatpush1.bf16.msra.mxu0 %v538
        %548 = vmatprep.subr.bf16.mxu0 0
        %549 = vmatpush1.bf16.msra.mxu0 %v539
        %550 = vmatprep.subr.bf16.mxu0 0
        %551 = vmatpush1.bf16.msra.mxu0 %v540
        %552 = vmatprep.subr.bf16.mxu0 0
        %553 = vmatpush1.bf16.msra.mxu0 %v541
        %554 = vmatprep.subr.bf16.mxu0 0
        %555 = vmatpush1.bf16.msra.mxu0 0
        %556 = vmatprep.subr.bf16.mxu0 0
        %557 = vmatpush1.bf16.msra.mxu0 0
        %558 = vmatprep.subr.bf16.mxu0 0
        %559 = vmatpush1.bf16.msra.mxu0 0
        %560 = vmatprep.subr.bf16.mxu0 0
        %561 = vmatpush1.bf16.msra.mxu0 0
        %562 = vmatprep.subr.bf16.mxu0 0
        %563 = vmatpush1.bf16.msra.mxu0 0
        %564 = vmatprep.subr.bf16.mxu0 0
        %565 = vmatpush1.bf16.msra.mxu0 0
        %566 = vmatprep.subr.bf16.mxu0 0
        %567 = vmatpush1.bf16.msra.mxu0 0
        %568 = vmatprep.subr.bf16.mxu0 0
        %569 = vmatpush1.bf16.msra.mxu0 0
        %570 = vmatprep.subr.bf16.mxu0 0
        %571 = vmatpush1.bf16.msra.mxu0 0
        %572 = vmatprep.subr.bf16.mxu0 0
        %573 = vmatpush1.bf16.msra.mxu0 0
        %574 = vmatprep.subr.bf16.mxu0 0
        %575 = vmatpush1.bf16.msra.mxu0 0
        %576 = vmatprep.subr.bf16.mxu0 0
        %577 = vmatpush1.bf16.msra.mxu0 0
        %578 = vmatprep.mubr.bf16.mxu0 0
        %579 = vmatmul.mubr.bf16.gmra.mrb[0].mxu0 %v398
        %v580 = vpop.f32.mrb[0].mxu0
        %v581 = vadd.f32 0.0, %v580
        %v582 = vpop.f32.mrb[0].mxu0
        %v583 = vpop.f32.mrb[0].mxu0
        %v584 = vadd.f32 0.0, %v583
        %v585 = vpop.f32.mrb[0].mxu0
        %586 = vdwg.mxu0
        %v587 = vpack.c.bf16 %v438, %v435
        %v588 = vpack.c.bf16 %v511, %v508
        %v589 = vpack.c.bf16 %v584, %v581
        %vm590 = vcmask 130048
        %v592 = vsel %vm590, %v587, 0
        %v595 = vsel %vm590, %v588, 0
        %597 = vmatprep.subr.bf16.mxu0 0
        %598 = vmatpush1.bf16.xpose.msra.mxu0 %v595
        %599 = vmatprep.subr.bf16.mxu0 0
        %600 = vmatpush1.bf16.xpose.msra.mxu0 0
        %601 = vmatprep.subr.bf16.mxu0 0
        %602 = vmatpush1.bf16.xpose.msra.mxu0 0
        %603 = vmatprep.subr.bf16.mxu0 0
        %604 = vmatpush1.bf16.xpose.msra.mxu0 0
        %605 = vmatprep.subr.bf16.mxu0 0
        %606 = vmatpush1.bf16.xpose.msra.mxu0 0
        %607 = vmatprep.subr.bf16.mxu0 0
        %608 = vmatpush1.bf16.xpose.msra.mxu0 0
        %609 = vmatprep.subr.bf16.mxu0 0
        %610 = vmatpush1.bf16.xpose.msra.mxu0 0
        %611 = vmatprep.subr.bf16.mxu0 0
        %612 = vmatpush1.bf16.xpose.msra.mxu0 0
        %613 = vmatprep.subr.bf16.mxu0 0
        %614 = vmatpush1.bf16.xpose.msra.mxu0 0
        %615 = vmatprep.subr.bf16.mxu0 0
        %616 = vmatpush1.bf16.xpose.msra.mxu0 0
        %617 = vmatprep.subr.bf16.mxu0 0
        %618 = vmatpush1.bf16.xpose.msra.mxu0 0
        %619 = vmatprep.subr.bf16.mxu0 0
        %620 = vmatpush1.bf16.xpose.msra.mxu0 0
        %621 = vmatprep.subr.bf16.mxu0 0
        %622 = vmatpush1.bf16.xpose.msra.mxu0 0
        %623 = vmatprep.subr.bf16.mxu0 0
        %624 = vmatpush1.bf16.xpose.msra.mxu0 0
        %625 = vmatprep.subr.bf16.mxu0 0
        %626 = vmatpush1.bf16.xpose.msra.mxu0 0
        %627 = vmatprep.subr.bf16.mxu0 0
        %628 = vmatpush1.bf16.xpose.msra.mxu0 0
        %629 = vmatprep.mubr.bf16.mxu0 0
        %630 = vmatmul.mubr.bf16.gmra.mrb[0].mxu0 %v592
        %v631 = vpop.f32.mrb[0].mxu0
        %v632 = vadd.f32 0.0, %v631
        %v633 = vpop.f32.mrb[0].mxu0
        %v634 = vpop.f32.mrb[0].mxu0
        %v635 = vadd.f32 0.0, %v634
        %v636 = vpop.f32.mrb[0].mxu0
        %637 = vdwg.mxu0
        %v638 = vsel %vm590, %v632, -inf
        %639 = vmax.xlane.f32.xlu0 %v638
        %v640 = vpop.xlane.xlu0 %639
        %v641 = vsel %vm590, %v635, -inf
        %642 = vmax.xlane.f32.xlu0 %v641
        %v643 = vpop.xlane.xlu0 %642
        %v644 = vsub.f32 %v632, %v640
        %v645 = vsub.f32 %v635, %v643
        %v646 = vmul.f32 %v644, 1.442695
        %v647 = vpow.pop %v646
        %v648 = vmul.f32 %v645, 1.442695
        %v649 = vpow.pop %v648
        %v650 = vsel %vm590, %v647, 0.0
        %651 = vadd.xlane.f32.xlu0 %v650
        %v652 = vpop.xlane.xlu0 %651
        %v653 = vsel %vm590, %v649, 0.0
        %654 = vadd.xlane.f32.xlu0 %v653
        %v655 = vpop.xlane.xlu0 %654
        %v656 = vrcp.pop %v652
        %v657 = vrcp.pop %v655
        %v658 = vpack.c.bf16 %v649, %v647
        %v660 = vsel %vm590, %v658, 0
        %662 = vmatprep.subr.bf16.mxu0 0
        %663 = vmatpush1.bf16.msra.mxu0 %v589
        %664 = vmatprep.subr.bf16.mxu0 0
        %665 = vmatpush1.bf16.msra.mxu0 0
        %666 = vmatprep.subr.bf16.mxu0 0
        %667 = vmatpush1.bf16.msra.mxu0 0
        %668 = vmatprep.subr.bf16.mxu0 0
        %669 = vmatpush1.bf16.msra.mxu0 0
        %670 = vmatprep.subr.bf16.mxu0 0
        %671 = vmatpush1.bf16.msra.mxu0 0
        %672 = vmatprep.subr.bf16.mxu0 0
        %673 = vmatpush1.bf16.msra.mxu0 0
        %674 = vmatprep.subr.bf16.mxu0 0
        %675 = vmatpush1.bf16.msra.mxu0 0
        %676 = vmatprep.subr.bf16.mxu0 0
        %677 = vmatpush1.bf16.msra.mxu0 0
        %678 = vmatprep.subr.bf16.mxu0 0
        %679 = vmatpush1.bf16.msra.mxu0 0
        %680 = vmatprep.subr.bf16.mxu0 0
        %681 = vmatpush1.bf16.msra.mxu0 0
        %682 = vmatprep.subr.bf16.mxu0 0
        %683 = vmatpush1.bf16.msra.mxu0 0
        %684 = vmatprep.subr.bf16.mxu0 0
        %685 = vmatpush1.bf16.msra.mxu0 0
        %686 = vmatprep.subr.bf16.mxu0 0
        %687 = vmatpush1.bf16.msra.mxu0 0
        %688 = vmatprep.subr.bf16.mxu0 0
        %689 = vmatpush1.bf16.msra.mxu0 0
        %690 = vmatprep.subr.bf16.mxu0 0
        %691 = vmatpush1.bf16.msra.mxu0 0
        %692 = vmatprep.subr.bf16.mxu0 0
        %693 = vmatpush1.bf16.msra.mxu0 0
        %694 = vmatprep.mubr.bf16.mxu0 0
        %695 = vmatmul.mubr.bf16.gmra.mrb[0].mxu0 %v660
        %v696 = vpop.f32.mrb[0].mxu0
        %v697 = vadd.f32 0.0, %v696
        %v698 = vpop.f32.mrb[0].mxu0
        %v699 = vpop.f32.mrb[0].mxu0
        %v700 = vadd.f32 0.0, %v699
        %v701 = vpop.f32.mrb[0].mxu0
        %702 = vdwg.mxu0
        %v703 = vmul.f32 %v697, %v656
        %v704 = vmul.f32 %v700, %v657
        %v705 = vpack.c.bf16 %v704, %v703
        %v706 = vld [vmem:[#allocation2] sm:$0xff]
        %v707 = vld [vmem:[#allocation2 + $0x8] sm:$0xff]
        %v708 = vld [vmem:[%s341] sm:$0xf]
        %v709 = vld [vmem:[%s341 + $0x4] sm:$0xf]
        %v712 = vunpack.c.l.b16 %v708
        %v713 = vunpack.c.l.b16 %v709
        %v714 = vpack.c.b16 %v713, %v712
        %v717 = vsel %vm590, %v705, 0
        %719 = vmatprep.subr.bf16.mxu0 0
        %720 = vmatpush1.bf16.msra.mxu0 %v714
        %721 = vmatprep.subr.bf16.mxu0 0
        %722 = vmatpush1.bf16.msra.mxu0 0
        %723 = vmatprep.subr.bf16.mxu0 0
        %724 = vmatpush1.bf16.msra.mxu0 0
        %725 = vmatprep.subr.bf16.mxu0 0
        %726 = vmatpush1.bf16.msra.mxu0 0
        %727 = vmatprep.subr.bf16.mxu0 0
        %728 = vmatpush1.bf16.msra.mxu0 0
        %729 = vmatprep.subr.bf16.mxu0 0
        %730 = vmatpush1.bf16.msra.mxu0 0
        %731 = vmatprep.subr.bf16.mxu0 0
        %732 = vmatpush1.bf16.msra.mxu0 0
        %733 = vmatprep.subr.bf16.mxu0 0
        %734 = vmatpush1.bf16.msra.mxu0 0
        %735 = vmatprep.subr.bf16.mxu0 0
        %736 = vmatpush1.bf16.msra.mxu0 0
        %737 = vmatprep.subr.bf16.mxu0 0
        %738 = vmatpush1.bf16.msra.mxu0 0
        %739 = vmatprep.subr.bf16.mxu0 0
        %740 = vmatpush1.bf16.msra.mxu0 0
        %741 = vmatprep.subr.bf16.mxu0 0
        %742 = vmatpush1.bf16.msra.mxu0 0
        %743 = vmatprep.subr.bf16.mxu0 0
        %744 = vmatpush1.bf16.msra.mxu0 0
        %745 = vmatprep.subr.bf16.mxu0 0
        %746 = vmatpush1.bf16.msra.mxu0 0
        %747 = vmatprep.subr.bf16.mxu0 0
        %748 = vmatpush1.bf16.msra.mxu0 0
        %749 = vmatprep.subr.bf16.mxu0 0
        %750 = vmatpush1.bf16.msra.mxu0 0
        %751 = vmatprep.mubr.bf16.mxu0 0
        %752 = vmatmul.mubr.bf16.gmra.mrb[0].mxu0 %v717
        %v753 = vpop.f32.mrb[0].mxu0
        %v754 = vadd.f32 0.0, %v753
        %v755 = vpop.f32.mrb[0].mxu0
        %v756 = vpop.f32.mrb[0].mxu0
        %v757 = vadd.f32 0.0, %v756
        %v758 = vpop.f32.mrb[0].mxu0
        %759 = vdwg.mxu0
        %v760 = vadd.f32 %v706, %v754
        %v761 = vadd.f32 %v707, %v757
        %762 = vst.msk [vmem:[#allocation2] sm:$0xff] %vm396, %v760
        %763 = vst.msk [vmem:[#allocation2 + $0x8] sm:$0xff] %vm396, %v761
        %p764 = scmp.eq.s32.totalorder %s25, 3
        // Predicated region
        $region49: #{tpu_custom_call.1} parent=43 // pred_check
          %p765 = pneg %p764
        $region50: #{tpu_custom_call.1} parent=43 // pred_check_branch
          %767 = sbr.rel (%p765) target = $region52
        $region51: #{tpu_custom_call.1} parent=43 // pred_region
          %v768 = vld [vmem:[#allocation2] sm:$0xff]
          %v769 = vld [vmem:[#allocation2 + $0x8] sm:$0xff]
          %770 = vst.msk [vmem:[%s316] sm:$0xff] %vm396, %v768
          %771 = vst.msk [vmem:[%s316 + $0x8] sm:$0xff] %vm396, %v769
        $region52: #{tpu_custom_call.1} parent=43 // pred_fallthru
          _
        %s772 = sand.u32 %s191, 1
        %s773 = scalar_lea.sflag [#allocation4], %s772
        %s774 = sand.u32 %s191, 1
        %s775 = smul.addr %s774, 16
        %s776 = scalar_lea.vmem [#allocation3], %s775
        // Predicated region
        $region53: #{tpu_custom_call.1} parent=43 // pred_check
          %p777 = pneg %p201
        $region54: #{tpu_custom_call.1} parent=43 // pred_check_branch
          %779 = sbr.rel (%p777) target = $region56
        $region55: #{tpu_custom_call.1} parent=43 // pred_region
          %s781 = ssub.s32 256, 256
          %782 = vsyncadd %s773, %s781
          %s783 = smul.addr %s24, 2
          %s784 = smul.addr %s783, 128
          %s785 = scalar_lea.hbm %s6, %s784
          %s786 = sshll.u32 %s776, 4
          %s787 = int_to_ptr.vmem [resolvable:$true] %s786
          %792 = dma.vmem_to_hbm [thread:$0]  %s787, 256, %s785, %s773, 128, 128, 8
        $region56: #{tpu_custom_call.1} parent=43 // pred_fallthru
          _
      $region44: #{tpu_custom_call.1} parent=5 // pred_fallthru
        _
      %p793 = scmp.le.s32.totalorder 2, %s15
      // Predicated region
      $region57: #{tpu_custom_call.1} parent=5 // pred_check
        %p794 = pneg %p793
      $region58: #{tpu_custom_call.1} parent=5 // pred_check_branch
        %796 = sbr.rel (%p794) target = $region60
      $region59: #{tpu_custom_call.1} parent=5 // pred_region
        %s797 = ssub.s32 %s15, 2
        // Predicated region
        $region61: #{tpu_custom_call.1} parent=59 // pred_check
          %p798 = pneg %p207
        $region62: #{tpu_custom_call.1} parent=59 // pred_check_branch
          %800 = sbr.rel (%p798) target = $region64
        $region63: #{tpu_custom_call.1} parent=59 // pred_region
          %s801 = sand.u32 %s192, 1
          %s802 = scalar_lea.sflag [#allocation4], %s801
          %s803 = sand.u32 %s192, 1
          %s804 = smul.addr %s803, 16
          %s805 = scalar_lea.vmem [#allocation3], %s804
          %806 = dma.done %s802, 256
        $region64: #{tpu_custom_call.1} parent=59 // pred_fallthru
          _
      $region60: #{tpu_custom_call.1} parent=5 // pred_fallthru
        _
    $region6: #{tpu_custom_call.1} parent=1 // loop_footer
      %s19 = sadd.s32 1, %s15
    $region7: #{tpu_custom_call.1} parent=1 // loop_footer_branch
      %14 = sbr.rel target = $region3
    $region8: #{tpu_custom_call.1} parent=1 // loop_exit
      _
    %807 = vsyncpa [#allocation4], 1
    %s808 = scalar_lea.sflag [#allocation4], 1
    %809 = vsyncpa %s808, 1

</llo_original>
